<compile_context>
chip_gen: v5e
topology: v5e:2x2
jax: 0.10.0
libtpu: 0.0.40
codegen_flags: <defaults>
</compile_context>

<pallas_src>
import jax
import jax.numpy as jnp
import numpy as np
from jax.experimental import pallas as pl
from jax.experimental.pallas import tpu as pltpu

_EPS = 1e-5


def _vmem_limit_bytes():
    # Generation-aware VMEM budget (review): ~7/8 of physical capacity, capped
    # so the same tiling runs on v5e/v6e (128 MiB) and v7x (64 MiB -> ~56 MiB).
    try:
        cap = int(pltpu.get_tpu_info().vmem_capacity_bytes)
    except Exception:
        cap = 128 * 1024 * 1024
    return int(min(cap * 7 // 8, 112 * 1024 * 1024))


def phase1_kernel(x_ref, t_ref, sc1_ref, sh1_ref, w1_ref, bias1_ref, wt_ref,
                  h_ref, s12_ref, pad_ref):
    """One batch band: h = conv1(swish(norm1(x))) + time_emb(t) and per-band
    BatchNorm2 partial statistics (sum, sum of squares per lane)."""
    H = x_ref.shape[1]
    WC1 = x_ref.shape[2]

    # norm1 (finalized per-channel scale/shift, pre-tiled per lane) + Swish,
    # stored once as bf16 into the H-halo padded scratch (review: bf16 scratch,
    # single cast instead of 3 per-tap casts).
    a1 = x_ref[0] * sc1_ref[...] + sh1_ref[...]
    a1 = a1 * jax.nn.sigmoid(a1)
    pad_ref[0:1, :] = jnp.zeros((1, WC1), jnp.bfloat16)
    pad_ref[H + 1:H + 2, :] = jnp.zeros((1, WC1), jnp.bfloat16)
    pad_ref[1:H + 1, :] = a1.astype(jnp.bfloat16)

    # time embedding for this batch element, folded into the conv1 bias
    # (review: no (B*H, W*C2) broadcast materialization).
    temb = jnp.dot(t_ref[0].astype(jnp.bfloat16), wt_ref[...],
                   preferred_element_type=jnp.float32)
    bias = bias1_ref[...] + temb                                     # (1, W*C2)

    # 3x3 'SAME' conv as 3 banded bf16 matmuls (kx taps + W zero-padding baked
    # into the weights); accumulator initialized from the first tap (review).
    acc = jnp.dot(pad_ref[0:H, :], w1_ref[0], preferred_element_type=jnp.float32)
    acc = acc + jnp.dot(pad_ref[1:H + 1, :], w1_ref[1],
                        preferred_element_type=jnp.float32)
    acc = acc + jnp.dot(pad_ref[2:H + 2, :], w1_ref[2],
                        preferred_element_type=jnp.float32)
    h = acc + bias                                                   # (H, W*C2)
    h_ref[0] = h

    # per-band BatchNorm2 partials, lane-wise; folded to channels and combined
    # across bands in the wrapper (two-phase BN enables the parallel grid).
    # TODO(synk): use Welford/Chan combining at real activation scales instead
    # of one-pass E[x^2]-E[x]^2.
    s1 = jnp.sum(h, axis=0, keepdims=True)
    s2 = jnp.sum(h * h, axis=0, keepdims=True)
    s12_ref[0] = jnp.concatenate([s1, s2], axis=0)


def phase2_kernel(h_ref, x_ref, sc2_ref, sh2_ref, w2_ref, bias2_ref, ws_ref,
                  out_ref, pad_ref):
    """One batch band: out = conv2(swish(norm2(h))) + conv1x1(x); attn = Id."""
    H = h_ref.shape[1]
    WC2 = h_ref.shape[2]

    # 1x1-conv shortcut as a block-diagonal matmul, issued first so the f32 x
    # band's live range ends before conv2 (review: early shortcut).  The
    # combined (b2 + bs) bias is folded in here.
    sc = jnp.dot(x_ref[0].astype(jnp.bfloat16), ws_ref[...],
                 preferred_element_type=jnp.float32) + bias2_ref[...]

    a2 = h_ref[0] * sc2_ref[...] + sh2_ref[...]
    a2 = a2 * jax.nn.sigmoid(a2)
    pad_ref[0:1, :] = jnp.zeros((1, WC2), jnp.bfloat16)
    pad_ref[H + 1:H + 2, :] = jnp.zeros((1, WC2), jnp.bfloat16)
    pad_ref[1:H + 1, :] = a2.astype(jnp.bfloat16)

    acc = jnp.dot(pad_ref[0:H, :], w2_ref[0], preferred_element_type=jnp.float32)
    acc = acc + jnp.dot(pad_ref[1:H + 1, :], w2_ref[1],
                        preferred_element_type=jnp.float32)
    acc = acc + jnp.dot(pad_ref[2:H + 2, :], w2_ref[2],
                        preferred_element_type=jnp.float32)
    # single lane-dense store with the residual add fused into it.
    out_ref[0] = acc + sc


def _banded_conv3x3(w_hwio, W):
    """(3,3,cin,cout) HWIO -> (3, W*cin, W*cout) banded weight matrices.

    banded[ky, r*cin + i, w*cout + o] = w[ky, r-w+1, i, o] if |r-w| <= 1 else 0,
    i.e. the kx taps and W zero-padding of a 'SAME' 3x3 conv expressed as a
    matmul over the flattened (W*cin) lane axis.
    """
    kh, kw, cin, cout = w_hwio.shape
    sel = np.zeros((kw, W, W), np.float32)
    for kx in range(kw):
        for w in range(W):
            r = w + kx - 1
            if 0 <= r < W:
                sel[kx, r, w] = 1.0
    banded = jnp.einsum("xrw,yxio->yriwo", jnp.asarray(sel), w_hwio)
    return banded.reshape(kh, W * cin, W * cout)


def upblock_forward(x_nchw, t, p):
    B, C1, H, W = x_nchw.shape
    C2 = p["w1"].shape[-1]
    T = t.shape[-1]
    WC1, WC2 = W * C1, W * C2
    f32, bf16 = jnp.float32, jnp.bfloat16

    # NCHW -> NHWC; (W, C) folded onto the lane axis (contiguous reshape).
    # TODO(synk): at real sizes keep activations in this flattened layout across
    # UNet blocks so these transposes (extra HBM round trips) disappear.
    x_nhwc = jnp.transpose(x_nchw, (0, 2, 3, 1)).astype(f32)       # (B,H,W,C1)
    x = x_nhwc.reshape(B, H, WC1)
    t3 = t.astype(f32).reshape(B, 1, T)

    # ---- BatchNorm1 scale/shift (phase 0 of two-phase BN; stable two-pass) ----
    mean1 = jnp.mean(x_nhwc, axis=(0, 1, 2))
    var1 = jnp.mean(jnp.square(x_nhwc - mean1), axis=(0, 1, 2))     # biased (training mode)
    scale1 = p["g1"].reshape(-1) * jax.lax.rsqrt(var1 + _EPS)
    shift1 = p["be1"].reshape(-1) - mean1 * scale1
    # TODO(synk): BatchNorm running-statistics updates (training-time side
    # effect) are not reproduced; only the forward output is.

    tile_lane = lambda v: jnp.tile(v.reshape(-1).astype(f32), (W,)).reshape(1, -1)

    # ---- weights as lane-dense matmul operands (one-time layout plumbing) ----
    # TODO(synk): once C2 is lane-dense (>=128/256 channels at real UNet widths)
    # switch from banded O(W^2*Cin*Cout) weights to channels-on-lanes dense-tap
    # convs (9 (Cin,Cout) matmuls over row-shifted LHS) to fit v7x's 64 MiB VMEM.
    w1b = _banded_conv3x3(p["w1"].astype(f32), W).astype(bf16)       # (3, W*C1, W*C2)
    w2b = _banded_conv3x3(p["w2"].astype(f32), W).astype(bf16)       # (3, W*C2, W*C2)
    wsb = jnp.kron(jnp.eye(W, dtype=f32), p["ws"].astype(f32)).astype(bf16)
    wtb = jnp.tile(p["wt"].astype(f32), (1, W)).astype(bf16)         # (T, W*C2)

    sc1f, sh1f = tile_lane(scale1), tile_lane(shift1)
    bias1f = tile_lane(p["b1"] + p["bt"])                            # conv1 bias + time bias
    bias2f = tile_lane(p["b2"] + p["bs"])                            # conv2 bias + shortcut bias

    cparams = pltpu.CompilerParams(dimension_semantics=("parallel",),
                                   vmem_limit_bytes=_vmem_limit_bytes())

    # ---- pass 1: h = conv1(swish(norm1(x))) + time_emb(t); BN2 partials ----
    # Grid over batch: both v7x TensorCores busy, no conv halo across bands.
    # TODO(synk): at real sizes also band over H (two-phase stats already allow
    # it) and size bands so M = rows-per-band >= 256 for MXU utilization.
    h, s12 = pl.pallas_call(
        phase1_kernel,
        out_shape=(jax.ShapeDtypeStruct((B, H, WC2), f32),
                   jax.ShapeDtypeStruct((B, 2, WC2), f32)),
        grid_spec=pltpu.PrefetchScalarGridSpec(
            num_scalar_prefetch=0,
            grid=(B,),
            in_specs=[
                pl.BlockSpec((1, H, WC1), lambda b: (b, 0, 0)),      # x band
                pl.BlockSpec((1, 1, T), lambda b: (b, 0, 0)),        # t band
                pl.BlockSpec((1, WC1), lambda b: (0, 0)),            # norm1 scale
                pl.BlockSpec((1, WC1), lambda b: (0, 0)),            # norm1 shift
                pl.BlockSpec((3, WC1, WC2), lambda b: (0, 0, 0)),    # conv1 banded
                pl.BlockSpec((1, WC2), lambda b: (0, 0)),            # b1 + bt (tiled)
                pl.BlockSpec((T, WC2), lambda b: (0, 0)),            # time_emb weight
            ],
            out_specs=[
                pl.BlockSpec((1, H, WC2), lambda b: (b, 0, 0)),      # h band
                pl.BlockSpec((1, 2, WC2), lambda b: (b, 0, 0)),      # BN2 partials
            ],
            scratch_shapes=[pltpu.VMEM((H + 2, WC1), bf16)]),
        compiler_params=cparams,
    )(x, t3, sc1f, sh1f, w1b, bias1f, wtb)

    # ---- BatchNorm2 scale/shift from per-band partials (tiny XLA reduce) ----
    s = jnp.sum(s12, axis=0).reshape(2, W, C2).sum(axis=1)           # (2, C2)
    n_px = float(B * H * W)
    mean2 = s[0] / n_px
    var2 = jnp.maximum(s[1] / n_px - mean2 * mean2, 0.0)
    scale2 = p["g2"].reshape(-1) * jax.lax.rsqrt(var2 + _EPS)
    shift2 = p["be2"].reshape(-1) - mean2 * scale2
    sc2f, sh2f = tile_lane(scale2), tile_lane(shift2)

    # ---- pass 2: out = conv2(swish(norm2(h))) + conv1x1(x); attn = Identity ----
    out = pl.pallas_call(
        phase2_kernel,
        out_shape=jax.ShapeDtypeStruct((B, H, WC2), f32),
        grid_spec=pltpu.PrefetchScalarGridSpec(
            num_scalar_prefetch=0,
            grid=(B,),
            in_specs=[
                pl.BlockSpec((1, H, WC2), lambda b: (b, 0, 0)),      # h band
                pl.BlockSpec((1, H, WC1), lambda b: (b, 0, 0)),      # x band (shortcut)
                pl.BlockSpec((1, WC2), lambda b: (0, 0)),            # norm2 scale
                pl.BlockSpec((1, WC2), lambda b: (0, 0)),            # norm2 shift
                pl.BlockSpec((3, WC2, WC2), lambda b: (0, 0, 0)),    # conv2 banded
                pl.BlockSpec((1, WC2), lambda b: (0, 0)),            # b2 + bs (tiled)
                pl.BlockSpec((WC1, WC2), lambda b: (0, 0)),          # 1x1 shortcut
            ],
            out_specs=pl.BlockSpec((1, H, WC2), lambda b: (b, 0, 0)),
            scratch_shapes=[pltpu.VMEM((H + 2, WC2), bf16)]),
        compiler_params=cparams,
    )(h, x, sc2f, sh2f, w2b, bias2f, wsb)

    # (B, H, W*C2) -> NCHW to match the PyTorch module interface
    return jnp.transpose(out.reshape(B, H, W, C2), (0, 3, 1, 2))


def init_params(key, c_in_total, c_out, t_ch):
    ks = jax.random.split(key, 12)
    n = jax.random.normal
    return {
        "g1":  1.0 + 0.1 * n(ks[0], (1, c_in_total), jnp.float32),
        "be1": 0.1 * n(ks[1], (1, c_in_total), jnp.float32),
        "w1":  0.1 * n(ks[2], (3, 3, c_in_total, c_out), jnp.float32),  # HWIO
        "b1":  0.1 * n(ks[3], (1, c_out), jnp.float32),
        "wt":  0.1 * n(ks[4], (t_ch, c_out), jnp.float32),
        "bt":  0.1 * n(ks[5], (1, c_out), jnp.float32),
        "g2":  1.0 + 0.1 * n(ks[6], (1, c_out), jnp.float32),
        "be2": 0.1 * n(ks[7], (1, c_out), jnp.float32),
        "w2":  0.1 * n(ks[8], (3, 3, c_out, c_out), jnp.float32),       # HWIO
        "b2":  0.1 * n(ks[9], (1, c_out), jnp.float32),
        "ws":  0.1 * n(ks[10], (c_in_total, c_out), jnp.float32),       # 1x1 conv
        "bs":  0.1 * n(ks[11], (1, c_out), jnp.float32),
    }


def ref_upblock_nhwc(x, t, p):
    # Reference matches the module semantics; matmul/conv operands are cast to
    # bf16 (f32 accumulation) to match the kernel's MXU precision.
    def bn(v, g, b):
        m = v.mean(axis=(0, 1, 2), keepdims=True)
        va = jnp.square(v - m).mean(axis=(0, 1, 2), keepdims=True)
        return (v - m) / jnp.sqrt(va + _EPS) * g.reshape(1, 1, 1, -1) + b.reshape(1, 1, 1, -1)

    def sw(v):
        return v * jax.nn.sigmoid(v)

    def conv(v, w, b):
        o = jax.lax.conv_general_dilated(
            v.astype(jnp.bfloat16), w.astype(jnp.bfloat16),
            window_strides=(1, 1), padding="SAME",
            dimension_numbers=("NHWC", "HWIO", "NHWC"),
            preferred_element_type=jnp.float32)
        return o + b.reshape(1, 1, 1, -1)

    h = conv(sw(bn(x, p["g1"], p["be1"])), p["w1"], p["b1"])
    temb = jnp.dot(t.astype(jnp.bfloat16), p["wt"].astype(jnp.bfloat16),
                   preferred_element_type=jnp.float32) + p["bt"]
    h = h + temb[:, None, None, :]
    h = conv(sw(bn(h, p["g2"], p["be2"])), p["w2"], p["b2"])
    sc = jnp.einsum("bhwc,co->bhwo", x.astype(jnp.bfloat16),
                    p["ws"].astype(jnp.bfloat16),
                    preferred_element_type=jnp.float32) + p["bs"].reshape(1, 1, 1, -1)
    return h + sc


if __name__ == "__main__":
    B, IN_CH, OUT_CH, T_CH, H, W = 2, 4, 8, 16, 16, 16
    C1 = IN_CH + OUT_CH  # UpBlock's ResidualBlock takes concat(skip, x) channels

    key = jax.random.PRNGKey(0)
    kx, kt, kp = jax.random.split(key, 3)
    x = jax.random.normal(kx, (B, C1, H, W), jnp.float32)   # NCHW like PyTorch
    t = jax.random.normal(kt, (B, T_CH), jnp.float32)
    params = init_params(kp, C1, OUT_CH, T_CH)

    out = jax.block_until_ready(upblock_forward(x, t, params))

    ref = ref_upblock_nhwc(jnp.transpose(x, (0, 2, 3, 1)), t, params)
    ref = jnp.transpose(ref, (0, 3, 1, 2))
    assert out.shape == (B, OUT_CH, H, W), out.shape
    err = float(jnp.max(jnp.abs(out - ref)))
    if err > 1e-2:
        raise AssertionError(f"mismatch vs reference: max abs err {err}")
    print("KERNEL_OK")
</pallas_src>

<mosaic_0001>
module attributes {stable_mosaic.version = 11 : i64} {
  func.func @phase1_kernel(%arg0: i32, %arg1: memref<1x16x192xf32, #tpu.memory_space<vmem>>, %arg2: memref<1x1x16xf32, #tpu.memory_space<vmem>>, %arg3: memref<1x192xf32, #tpu.memory_space<vmem>>, %arg4: memref<1x192xf32, #tpu.memory_space<vmem>>, %arg5: memref<3x192x128xbf16, #tpu.memory_space<vmem>>, %arg6: memref<1x128xf32, #tpu.memory_space<vmem>>, %arg7: memref<16x128xbf16, #tpu.memory_space<vmem>>, %arg8: memref<1x16x128xf32, #tpu.memory_space<vmem>>, %arg9: memref<1x2x128xf32, #tpu.memory_space<vmem>>, %arg10: memref<18x192xbf16, #tpu.memory_space<vmem>>) attributes {dimension_semantics = [#tpu.dimension_semantics<parallel>], iteration_bounds = array<i64: 2>, scalar_prefetch = 0 : i64, scratch_operands = 1 : i64, tpu.core_type = #tpu.core_type<tc>, window_params = [{transform_indices = @transform_0, window_bounds = array<i64: 1, 16, 192>}, {transform_indices = @transform_1, window_bounds = array<i64: 1, 1, 16>}, {pipeline_mode = #tpu.pipeline_mode<synchronous>, transform_indices = @transform_2, window_bounds = array<i64: 1, 192>}, {pipeline_mode = #tpu.pipeline_mode<synchronous>, transform_indices = @transform_3, window_bounds = array<i64: 1, 192>}, {pipeline_mode = #tpu.pipeline_mode<synchronous>, transform_indices = @transform_4, window_bounds = array<i64: 3, 192, 128>}, {pipeline_mode = #tpu.pipeline_mode<synchronous>, transform_indices = @transform_5, window_bounds = array<i64: 1, 128>}, {pipeline_mode = #tpu.pipeline_mode<synchronous>, transform_indices = @transform_6, window_bounds = array<i64: 16, 128>}, {transform_indices = @transform_7, window_bounds = array<i64: 1, 16, 128>}, {transform_indices = @transform_8, window_bounds = array<i64: 1, 2, 128>}]} {
    %c0 = arith.constant 0 : index
    %c0_0 = arith.constant 0 : index
    %c0_1 = arith.constant 0 : index
    %0 = vector.load %arg1[%c0, %c0_0, %c0_1] : memref<1x16x192xf32, #tpu.memory_space<vmem>>, vector<1x16x192xf32>
    %1 = vector.shape_cast %0 : vector<1x16x192xf32> to vector<16x192xf32>
    %c0_2 = arith.constant 0 : index
    %c0_3 = arith.constant 0 : index
    %2 = vector.load %arg3[%c0_2, %c0_3] : memref<1x192xf32, #tpu.memory_space<vmem>>, vector<1x192xf32>
    %3 = vector.broadcast %2 : vector<1x192xf32> to vector<16x192xf32>
    %4 = arith.mulf %1, %3 : vector<16x192xf32>
    %c0_4 = arith.constant 0 : index
    %c0_5 = arith.constant 0 : index
    %5 = vector.load %arg4[%c0_4, %c0_5] : memref<1x192xf32, #tpu.memory_space<vmem>>, vector<1x192xf32>
    %6 = vector.broadcast %5 : vector<1x192xf32> to vector<16x192xf32>
    %7 = arith.addf %4, %6 : vector<16x192xf32>
    %8 = arith.negf %7 : vector<16x192xf32>
    %9 = math.exp %8 : vector<16x192xf32>
    %cst = arith.constant 1.000000e+00 : f32
    %10 = vector.broadcast %cst : f32 to vector<16x192xf32>
    %11 = arith.addf %10, %9 : vector<16x192xf32>
    %12 = arith.divf %10, %11 : vector<16x192xf32>
    %13 = arith.mulf %7, %12 : vector<16x192xf32>
    %cst_6 = arith.constant 0.000000e+00 : bf16
    %14 = vector.broadcast %cst_6 : bf16 to vector<1x192xbf16>
    %c0_7 = arith.constant 0 : index
    %c0_8 = arith.constant 0 : index
    %15 = vector.load %arg10[%c0_7, %c0_8] : memref<18x192xbf16, #tpu.memory_space<vmem>>, vector<1x192xbf16>
    tpu.vector_store %arg10[%c0_7, %c0_8], %14 {strides = array<i32>} : memref<18x192xbf16, #tpu.memory_space<vmem>>, vector<1x192xbf16>,
    %cst_9 = arith.constant 0.000000e+00 : bf16
    %16 = vector.broadcast %cst_9 : bf16 to vector<1x192xbf16>
    %c17 = arith.constant 17 : index
    %c0_10 = arith.constant 0 : index
    %17 = vector.load %arg10[%c17, %c0_10] : memref<18x192xbf16, #tpu.memory_space<vmem>>, vector<1x192xbf16>
    tpu.vector_store %arg10[%c17, %c0_10], %16 {strides = array<i32>} : memref<18x192xbf16, #tpu.memory_space<vmem>>, vector<1x192xbf16>,
    %18 = arith.truncf %13 : vector<16x192xf32> to vector<16x192xbf16>
    %c1 = arith.constant 1 : index
    %c0_11 = arith.constant 0 : index
    %19 = vector.load %arg10[%c1, %c0_11] : memref<18x192xbf16, #tpu.memory_space<vmem>>, vector<16x192xbf16>
    tpu.vector_store %arg10[%c1, %c0_11], %18 {strides = array<i32>} : memref<18x192xbf16, #tpu.memory_space<vmem>>, vector<16x192xbf16>,
    %c0_12 = arith.constant 0 : index
    %c0_13 = arith.constant 0 : index
    %c0_14 = arith.constant 0 : index
    %20 = vector.load %arg2[%c0_12, %c0_13, %c0_14] : memref<1x1x16xf32, #tpu.memory_space<vmem>>, vector<1x1x16xf32>
    %21 = vector.shape_cast %20 : vector<1x1x16xf32> to vector<1x16xf32>
    %22 = arith.truncf %21 : vector<1x16xf32> to vector<1x16xbf16>
    %c0_15 = arith.constant 0 : index
    %c0_16 = arith.constant 0 : index
    %23 = vector.load %arg7[%c0_15, %c0_16] : memref<16x128xbf16, #tpu.memory_space<vmem>>, vector<16x128xbf16>
    %cst_17 = arith.constant dense<0.000000e+00> : vector<1x128xf32>
    %24 = tpu.matmul %22, %23, %cst_17 {dimension_numbers = #tpu.dot_dimension_numbers<[1], [0], [0], [1], [0, 0, 1, 1], [], []>} : vector<1x16xbf16>, vector<16x128xbf16>, vector<1x128xf32> -> vector<1x128xf32>
    %c0_18 = arith.constant 0 : index
    %c0_19 = arith.constant 0 : index
    %25 = vector.load %arg6[%c0_18, %c0_19] : memref<1x128xf32, #tpu.memory_space<vmem>>, vector<1x128xf32>
    %26 = arith.addf %25, %24 : vector<1x128xf32>
    %c0_20 = arith.constant 0 : index
    %c0_21 = arith.constant 0 : index
    %27 = vector.load %arg10[%c0_20, %c0_21] : memref<18x192xbf16, #tpu.memory_space<vmem>>, vector<16x192xbf16>
    %c0_22 = arith.constant 0 : index
    %c0_23 = arith.constant 0 : index
    %c0_24 = arith.constant 0 : index
    %28 = vector.load %arg5[%c0_22, %c0_23, %c0_24] : memref<3x192x128xbf16, #tpu.memory_space<vmem>>, vector<1x192x128xbf16>
    %29 = vector.shape_cast %28 : vector<1x192x128xbf16> to vector<192x128xbf16>
    %cst_25 = arith.constant dense<0.000000e+00> : vector<16x128xf32>
    %30 = tpu.matmul %27, %29, %cst_25 {dimension_numbers = #tpu.dot_dimension_numbers<[1], [0], [0], [1], [0, 0, 1, 1], [], []>} : vector<16x192xbf16>, vector<192x128xbf16>, vector<16x128xf32> -> vector<16x128xf32>
    %c1_26 = arith.constant 1 : index
    %c0_27 = arith.constant 0 : index
    %31 = vector.load %arg10[%c1_26, %c0_27] : memref<18x192xbf16, #tpu.memory_space<vmem>>, vector<16x192xbf16>
    %c1_28 = arith.constant 1 : index
    %c0_29 = arith.constant 0 : index
    %c0_30 = arith.constant 0 : index
    %32 = vector.load %arg5[%c1_28, %c0_29, %c0_30] : memref<3x192x128xbf16, #tpu.memory_space<vmem>>, vector<1x192x128xbf16>
    %33 = vector.shape_cast %32 : vector<1x192x128xbf16> to vector<192x128xbf16>
    %cst_31 = arith.constant dense<0.000000e+00> : vector<16x128xf32>
    %34 = tpu.matmul %31, %33, %cst_31 {dimension_numbers = #tpu.dot_dimension_numbers<[1], [0], [0], [1], [0, 0, 1, 1], [], []>} : vector<16x192xbf16>, vector<192x128xbf16>, vector<16x128xf32> -> vector<16x128xf32>
    %35 = arith.addf %30, %34 : vector<16x128xf32>
    %c2 = arith.constant 2 : index
    %c0_32 = arith.constant 0 : index
    %36 = vector.load %arg10[%c2, %c0_32] : memref<18x192xbf16, #tpu.memory_space<vmem>>, vector<16x192xbf16>
    %c2_33 = arith.constant 2 : index
    %c0_34 = arith.constant 0 : index
    %c0_35 = arith.constant 0 : index
    %37 = vector.load %arg5[%c2_33, %c0_34, %c0_35] : memref<3x192x128xbf16, #tpu.memory_space<vmem>>, vector<1x192x128xbf16>
    %38 = vector.shape_cast %37 : vector<1x192x128xbf16> to vector<192x128xbf16>
    %cst_36 = arith.constant dense<0.000000e+00> : vector<16x128xf32>
    %39 = tpu.matmul %36, %38, %cst_36 {dimension_numbers = #tpu.dot_dimension_numbers<[1], [0], [0], [1], [0, 0, 1, 1], [], []>} : vector<16x192xbf16>, vector<192x128xbf16>, vector<16x128xf32> -> vector<16x128xf32>
    %40 = arith.addf %35, %39 : vector<16x128xf32>
    %41 = vector.broadcast %26 : vector<1x128xf32> to vector<16x128xf32>
    %42 = arith.addf %40, %41 : vector<16x128xf32>
    %c0_37 = arith.constant 0 : index
    %c0_38 = arith.constant 0 : index
    %c0_39 = arith.constant 0 : index
    %43 = vector.load %arg8[%c0_37, %c0_38, %c0_39] : memref<1x16x128xf32, #tpu.memory_space<vmem>>, vector<1x16x128xf32>
    %44 = vector.shape_cast %43 : vector<1x16x128xf32> to vector<16x128xf32>
    %45 = vector.shape_cast %42 : vector<16x128xf32> to vector<1x16x128xf32>
    tpu.vector_store %arg8[%c0_37, %c0_38, %c0_39], %45 {strides = array<i32>} : memref<1x16x128xf32, #tpu.memory_space<vmem>>, vector<1x16x128xf32>,
    %cst_40 = arith.constant dense<0.000000e+00> : vector<128xf32>
    %46 = vector.multi_reduction <add>, %42, %cst_40 [0] : vector<16x128xf32> to vector<128xf32>
    %47 = vector.shape_cast %46 : vector<128xf32> to vector<1x128xf32>
    %48 = arith.mulf %42, %42 : vector<16x128xf32>
    %cst_41 = arith.constant dense<0.000000e+00> : vector<128xf32>
    %49 = vector.multi_reduction <add>, %48, %cst_41 [0] : vector<16x128xf32> to vector<128xf32>
    %50 = vector.shape_cast %49 : vector<128xf32> to vector<1x128xf32>
    %51 = tpu.concatenate %47, %50 in 0 : vector<1x128xf32>, vector<1x128xf32> -> vector<2x128xf32>
    %c0_42 = arith.constant 0 : index
    %c0_43 = arith.constant 0 : index
    %c0_44 = arith.constant 0 : index
    %52 = vector.load %arg9[%c0_42, %c0_43, %c0_44] : memref<1x2x128xf32, #tpu.memory_space<vmem>>, vector<1x2x128xf32>
    %53 = vector.shape_cast %52 : vector<1x2x128xf32> to vector<2x128xf32>
    %54 = vector.shape_cast %51 : vector<2x128xf32> to vector<1x2x128xf32>
    tpu.vector_store %arg9[%c0_42, %c0_43, %c0_44], %54 {strides = array<i32>} : memref<1x2x128xf32, #tpu.memory_space<vmem>>, vector<1x2x128xf32>,
    return
  }
  func.func @transform_0(%arg0: i32) -> (i32, i32, i32) {
    %c0_i32 = arith.constant 0 : i32
    %c0_i32_0 = arith.constant 0 : i32
    %c0_i32_1 = arith.constant 0 : i32
    return %arg0, %c0_i32, %c0_i32_0 : i32, i32, i32
  }
  func.func @transform_1(%arg0: i32) -> (i32, i32, i32) {
    %c0_i32 = arith.constant 0 : i32
    %c0_i32_0 = arith.constant 0 : i32
    %c0_i32_1 = arith.constant 0 : i32
    return %arg0, %c0_i32, %c0_i32_0 : i32, i32, i32
  }
  func.func @transform_2(%arg0: i32) -> (i32, i32) {
    %c0_i32 = arith.constant 0 : i32
    %c0_i32_0 = arith.constant 0 : i32
    %c0_i32_1 = arith.constant 0 : i32
    return %c0_i32, %c0_i32_0 : i32, i32
  }
  func.func @transform_3(%arg0: i32) -> (i32, i32) {
    %c0_i32 = arith.constant 0 : i32
    %c0_i32_0 = arith.constant 0 : i32
    %c0_i32_1 = arith.constant 0 : i32
    return %c0_i32, %c0_i32_0 : i32, i32
  }
  func.func @transform_4(%arg0: i32) -> (i32, i32, i32) {
    %c0_i32 = arith.constant 0 : i32
    %c0_i32_0 = arith.constant 0 : i32
    %c0_i32_1 = arith.constant 0 : i32
    %c0_i32_2 = arith.constant 0 : i32
    return %c0_i32, %c0_i32_0, %c0_i32_1 : i32, i32, i32
  }
  func.func @transform_5(%arg0: i32) -> (i32, i32) {
    %c0_i32 = arith.constant 0 : i32
    %c0_i32_0 = arith.constant 0 : i32
    %c0_i32_1 = arith.constant 0 : i32
    return %c0_i32, %c0_i32_0 : i32, i32
  }
  func.func @transform_6(%arg0: i32) -> (i32, i32) {
    %c0_i32 = arith.constant 0 : i32
    %c0_i32_0 = arith.constant 0 : i32
    %c0_i32_1 = arith.constant 0 : i32
    return %c0_i32, %c0_i32_0 : i32, i32
  }
  func.func @transform_7(%arg0: i32) -> (i32, i32, i32) {
    %c0_i32 = arith.constant 0 : i32
    %c0_i32_0 = arith.constant 0 : i32
    %c0_i32_1 = arith.constant 0 : i32
    return %arg0, %c0_i32, %c0_i32_0 : i32, i32, i32
  }
  func.func @transform_8(%arg0: i32) -> (i32, i32, i32) {
    %c0_i32 = arith.constant 0 : i32
    %c0_i32_0 = arith.constant 0 : i32
    %c0_i32_1 = arith.constant 0 : i32
    return %arg0, %c0_i32, %c0_i32_0 : i32, i32, i32
  }
}

</mosaic_0001>

<llo_original>
// kernel: tpu_custom_call.1
$region0: #{tpu_custom_call.1}
  #allocation0 [shape = 'u32[]', space=smem, size = 0x4, offset = 0x4, fixed_abs, tag = 'smem constant byte address 0x4 - core index']
  #allocation1 [shape = 'u32[72,128]{1,0:T(1,128)}', space=vmem, size = 0x9000, scoped, tag = 'internal scratch']
  #allocation2 [shape = 'bf16[18,192]{1,0:T(8,128)(2,1)}', space=vmem, size = 0x3000, scoped, tag = 'scratch operand']
  %s0 = inlined_call_operand.hbm [shape: f32[2,16,192], index: 0, kind: input, shape index: {}]
  %s1 = inlined_call_operand.hbm [shape: f32[2,1,16], index: 1, kind: input, shape index: {}]
  %s2 = inlined_call_operand.hbm [shape: f32[1,192], index: 2, kind: input, shape index: {}]
  %s3 = inlined_call_operand.vmem [shape: f32[1,192], index: 3, kind: input, shape index: {}]
  %s4 = inlined_call_operand.hbm [shape: bf16[3,192,128], index: 4, kind: input, shape index: {}]
  %s5 = inlined_call_operand.vmem [shape: f32[1,128], index: 5, kind: input, shape index: {}]
  %s6 = inlined_call_operand.hbm [shape: bf16[16,128], index: 6, kind: input, shape index: {}]
  %s7 = inlined_call_operand.hbm [shape: f32[2,16,128], index: 7, kind: output, shape index: {0}]
  %s8 = inlined_call_operand.hbm [shape: f32[2,2,128], index: 8, kind: output, shape index: {1}]
  %9 = xla_tuple %s7, %s8
  %s10 = sld [smem:[#allocation0]]
  $region89: #{tpu_custom_call.1} parent=0
    _
  %s12 = ssub.s32 1, %s10
  %s13 = scalar_select 0, %s12, %s10
  $region1: #{tpu_custom_call.1} parent=0
    #allocation3 [shape = 'u8[32768]{0}', space=vmem, size = 0x8000, scoped, tag = 'input window, operand 0']
    #allocation4 [shape = 's32[2]{0}', space=sflag, size = 0x8, scoped, tag = 'scoped memory for tpu_custom_call.1']
    #allocation5 [shape = 's32[2]{0}', space=sflag, size = 0x8, scoped, tag = 'scoped memory for tpu_custom_call.1']
    #allocation6 [shape = 'u8[1024]{0}', space=vmem, size = 0x400, scoped, tag = 'input window, operand 1']
    #allocation7 [shape = 's32[2]{0}', space=sflag, size = 0x8, scoped, tag = 'scoped memory for tpu_custom_call.1']
    #allocation8 [shape = 'u8[1024]{0}', space=vmem, size = 0x400, scoped, tag = 'input window, operand 2, single buffered']
    #allocation9 [shape = 'u8[147456]{0}', space=vmem, size = 0x24000, scoped, tag = 'input window, operand 4, single buffered']
    #allocation10 [shape = 's32[1]{0}', space=sflag, size = 0x4, scoped, tag = 'scoped memory for tpu_custom_call.1']
    #allocation11 [shape = 'u8[4096]{0}', space=vmem, size = 0x1000, scoped, tag = 'input window, operand 6, single buffered']
    #allocation12 [shape = 'u8[16384]{0}', space=vmem, size = 0x4000, scoped, tag = 'output window, operand 0']
    #allocation13 [shape = 'u8[2048]{0}', space=vmem, size = 0x800, scoped, tag = 'output window, operand 1']
    #allocation14 [shape = 's32[2]{0}', space=sflag, size = 0x8, scoped, tag = 'scoped memory for tpu_custom_call.1']
    %14 = vsyncpa [#allocation4], 0
    %s15 = scalar_lea.sflag [#allocation4], 1
    %16 = vsyncpa %s15, 0
    %17 = vsyncpa [#allocation7], 0
    %s18 = scalar_lea.sflag [#allocation7], 1
    %19 = vsyncpa %s18, 0
    %20 = vsyncpa [#allocation10], 0
    %21 = vsyncpa [#allocation5], 0
    %s22 = scalar_lea.sflag [#allocation5], 1
    %23 = vsyncpa %s22, 0
    %24 = vsyncpa [#allocation14], 0
    %s25 = scalar_lea.sflag [#allocation14], 1
    %26 = vsyncpa %s25, 0
    loop: start=0, step=1, limit=4
    $region2: #{tpu_custom_call.1} parent=1 // loop_pre_header
      _
    $region3: #{tpu_custom_call.1} parent=1 // loop_header
      %s28 = sphi 0, %s32
      %p29 = scmp.ge.s32.totalorder %s28, 4
      %s38 = sphi 0, %s40
      %s41 = sphi 0, %s38
      %s42 = sphi 0, %s41
      %s58 = sphi 0, %s42
      %s64 = sphi 0, %s66
      %s67 = sphi 0, %s64
      %s68 = sphi 0, %s67
      %s84 = sphi 0, %s68
      %s88 = sphi 0, %s88
      %s90 = sphi 0, %s88
      %s91 = sphi 0, %s90
      %s105 = sphi 0, %s91
      %s109 = sphi 0, %s109
      %s111 = sphi 0, %s109
      %s112 = sphi 0, %s111
      %s126 = sphi 0, %s112
      %s130 = sphi 0, %s130
      %s132 = sphi 0, %s130
      %s133 = sphi 0, %s132
      %s147 = sphi 0, %s133
      %s151 = sphi 0, %s151
      %s153 = sphi 0, %s151
      %s154 = sphi 0, %s153
      %s168 = sphi 0, %s154
      %s172 = sphi 0, %s172
      %s174 = sphi 0, %s172
      %s175 = sphi 0, %s174
      %s189 = sphi 0, %s175
      %s195 = sphi 0, %s197
      %s198 = sphi 0, %s195
      %s199 = sphi 0, %s198
      %s215 = sphi 0, %s199
      %s221 = sphi 0, %s223
      %s224 = sphi 0, %s221
      %s225 = sphi 0, %s224
      %s241 = sphi 0, %s225
    $region4: #{tpu_custom_call.1} parent=1 // loop_header_branch
      %31 = sbr.rel (%p29) target = $region8
    $region5: #{tpu_custom_call.1} parent=1 // loop_body
      %s33 = ssub.s32 %s28, 1
      %s34 = ssub.s32 %s28, 2
      %s35 = sadd.s32 %s28, 1
      %s36 = ssub.s32 %s28, %s35
      %p37 = scmp.eq.s32.totalorder %s36, 0
      %s39 = sadd.s32 %s38, 1
      %s40 = scalar_select %p37, %s38, %s39
      %p43 = pneg %p37
      %p44 = scmp.eq.s32.totalorder %s28, 1
      %p45 = por %p43, %p44
      %p46 = scmp.ne.s32.totalorder %s38, %s41
      %p47 = scmp.eq.s32.totalorder %s28, 0
      %p48 = por %p46, %p47
      %p49 = scmp.ne.s32.totalorder %s38, %s41
      %p50 = scmp.eq.s32.totalorder %s33, 1
      %p51 = por %p49, %p50
      %p52 = scmp.ne.s32.totalorder %s41, %s42
      %p53 = scmp.eq.s32.totalorder %s33, 0
      %p54 = por %p52, %p53
      %p55 = scmp.ne.s32.totalorder %s41, %s42
      %p56 = scmp.eq.s32.totalorder %s34, 1
      %p57 = por %p55, %p56
      %p59 = scmp.ne.s32.totalorder %s42, %s58
      %p60 = scmp.eq.s32.totalorder %s34, 0
      %p61 = por %p59, %p60
      %s62 = ssub.s32 %s28, %s35
      %p63 = scmp.eq.s32.totalorder %s62, 0
      %s65 = sadd.s32 %s64, 1
      %s66 = scalar_select %p63, %s64, %s65
      %p69 = pneg %p63
      %p70 = scmp.eq.s32.totalorder %s28, 1
      %p71 = por %p69, %p70
      %p72 = scmp.ne.s32.totalorder %s64, %s67
      %p73 = scmp.eq.s32.totalorder %s28, 0
      %p74 = por %p72, %p73
      %p75 = scmp.ne.s32.totalorder %s64, %s67
      %p76 = scmp.eq.s32.totalorder %s33, 1
      %p77 = por %p75, %p76
      %p78 = scmp.ne.s32.totalorder %s67, %s68
      %p79 = scmp.eq.s32.totalorder %s33, 0
      %p80 = por %p78, %p79
      %p81 = scmp.ne.s32.totalorder %s67, %s68
      %p82 = scmp.eq.s32.totalorder %s34, 1
      %p83 = por %p81, %p82
      %p85 = scmp.ne.s32.totalorder %s68, %s84
      %p86 = scmp.eq.s32.totalorder %s34, 0
      %p87 = por %p85, %p86
      %s89 = sadd.s32 %s88, 1
      %p92 = scmp.eq.s32.totalorder %s28, 1
      %p93 = scmp.ne.s32.totalorder %s88, %s90
      %p94 = scmp.eq.s32.totalorder %s28, 0
      %p95 = por %p93, %p94
      %p96 = scmp.ne.s32.totalorder %s88, %s90
      %p97 = scmp.eq.s32.totalorder %s33, 1
      %p98 = por %p96, %p97
      %p99 = scmp.ne.s32.totalorder %s90, %s91
      %p100 = scmp.eq.s32.totalorder %s33, 0
      %p101 = por %p99, %p100
      %p102 = scmp.ne.s32.totalorder %s90, %s91
      %p103 = scmp.eq.s32.totalorder %s34, 1
      %p104 = por %p102, %p103
      %p106 = scmp.ne.s32.totalorder %s91, %s105
      %p107 = scmp.eq.s32.totalorder %s34, 0
      %p108 = por %p106, %p107
      %s110 = sadd.s32 %s109, 1
      %p113 = scmp.eq.s32.totalorder %s28, 1
      %p114 = scmp.ne.s32.totalorder %s109, %s111
      %p115 = scmp.eq.s32.totalorder %s28, 0
      %p116 = por %p114, %p115
      %p117 = scmp.ne.s32.totalorder %s109, %s111
      %p118 = scmp.eq.s32.totalorder %s33, 1
      %p119 = por %p117, %p118
      %p120 = scmp.ne.s32.totalorder %s111, %s112
      %p121 = scmp.eq.s32.totalorder %s33, 0
      %p122 = por %p120, %p121
      %p123 = scmp.ne.s32.totalorder %s111, %s112
      %p124 = scmp.eq.s32.totalorder %s34, 1
      %p125 = por %p123, %p124
      %p127 = scmp.ne.s32.totalorder %s112, %s126
      %p128 = scmp.eq.s32.totalorder %s34, 0
      %p129 = por %p127, %p128
      %s131 = sadd.s32 %s130, 1
      %p134 = scmp.eq.s32.totalorder %s28, 1
      %p135 = scmp.ne.s32.totalorder %s130, %s132
      %p136 = scmp.eq.s32.totalorder %s28, 0
      %p137 = por %p135, %p136
      %p138 = scmp.ne.s32.totalorder %s130, %s132
      %p139 = scmp.eq.s32.totalorder %s33, 1
      %p140 = por %p138, %p139
      %p141 = scmp.ne.s32.totalorder %s132, %s133
      %p142 = scmp.eq.s32.totalorder %s33, 0
      %p143 = por %p141, %p142
      %p144 = scmp.ne.s32.totalorder %s132, %s133
      %p145 = scmp.eq.s32.totalorder %s34, 1
      %p146 = por %p144, %p145
      %p148 = scmp.ne.s32.totalorder %s133, %s147
      %p149 = scmp.eq.s32.totalorder %s34, 0
      %p150 = por %p148, %p149
      %s152 = sadd.s32 %s151, 1
      %p155 = scmp.eq.s32.totalorder %s28, 1
      %p156 = scmp.ne.s32.totalorder %s151, %s153
      %p157 = scmp.eq.s32.totalorder %s28, 0
      %p158 = por %p156, %p157
      %p159 = scmp.ne.s32.totalorder %s151, %s153
      %p160 = scmp.eq.s32.totalorder %s33, 1
      %p161 = por %p159, %p160
      %p162 = scmp.ne.s32.totalorder %s153, %s154
      %p163 = scmp.eq.s32.totalorder %s33, 0
      %p164 = por %p162, %p163
      %p165 = scmp.ne.s32.totalorder %s153, %s154
      %p166 = scmp.eq.s32.totalorder %s34, 1
      %p167 = por %p165, %p166
      %p169 = scmp.ne.s32.totalorder %s154, %s168
      %p170 = scmp.eq.s32.totalorder %s34, 0
      %p171 = por %p169, %p170
      %s173 = sadd.s32 %s172, 1
      %p176 = scmp.eq.s32.totalorder %s28, 1
      %p177 = scmp.ne.s32.totalorder %s172, %s174
      %p178 = scmp.eq.s32.totalorder %s28, 0
      %p179 = por %p177, %p178
      %p180 = scmp.ne.s32.totalorder %s172, %s174
      %p181 = scmp.eq.s32.totalorder %s33, 1
      %p182 = por %p180, %p181
      %p183 = scmp.ne.s32.totalorder %s174, %s175
      %p184 = scmp.eq.s32.totalorder %s33, 0
      %p185 = por %p183, %p184
      %p186 = scmp.ne.s32.totalorder %s174, %s175
      %p187 = scmp.eq.s32.totalorder %s34, 1
      %p188 = por %p186, %p187
      %p190 = scmp.ne.s32.totalorder %s175, %s189
      %p191 = scmp.eq.s32.totalorder %s34, 0
      %p192 = por %p190, %p191
      %s193 = ssub.s32 %s28, %s35
      %p194 = scmp.eq.s32.totalorder %s193, 0
      %s196 = sadd.s32 %s195, 1
      %s197 = scalar_select %p194, %s195, %s196
      %p200 = pneg %p194
      %p201 = scmp.eq.s32.totalorder %s28, 1
      %p202 = por %p200, %p201
      %p203 = scmp.ne.s32.totalorder %s195, %s198
      %p204 = scmp.eq.s32.totalorder %s28, 0
      %p205 = por %p203, %p204
      %p206 = scmp.ne.s32.totalorder %s195, %s198
      %p207 = scmp.eq.s32.totalorder %s33, 1
      %p208 = por %p206, %p207
      %p209 = scmp.ne.s32.totalorder %s198, %s199
      %p210 = scmp.eq.s32.totalorder %s33, 0
      %p211 = por %p209, %p210
      %p212 = scmp.ne.s32.totalorder %s198, %s199
      %p213 = scmp.eq.s32.totalorder %s34, 1
      %p214 = por %p212, %p213
      %p216 = scmp.ne.s32.totalorder %s199, %s215
      %p217 = scmp.eq.s32.totalorder %s34, 0
      %p218 = por %p216, %p217
      %s219 = ssub.s32 %s28, %s35
      %p220 = scmp.eq.s32.totalorder %s219, 0
      %s222 = sadd.s32 %s221, 1
      %s223 = scalar_select %p220, %s221, %s222
      %p226 = pneg %p220
      %p227 = scmp.eq.s32.totalorder %s28, 1
      %p228 = por %p226, %p227
      %p229 = scmp.ne.s32.totalorder %s221, %s224
      %p230 = scmp.eq.s32.totalorder %s28, 0
      %p231 = por %p229, %p230
      %p232 = scmp.ne.s32.totalorder %s221, %s224
      %p233 = scmp.eq.s32.totalorder %s33, 1
      %p234 = por %p232, %p233
      %p235 = scmp.ne.s32.totalorder %s224, %s225
      %p236 = scmp.eq.s32.totalorder %s33, 0
      %p237 = por %p235, %p236
      %p238 = scmp.ne.s32.totalorder %s224, %s225
      %p239 = scmp.eq.s32.totalorder %s34, 1
      %p240 = por %p238, %p239
      %p242 = scmp.ne.s32.totalorder %s225, %s241
      %p243 = scmp.eq.s32.totalorder %s34, 0
      %p244 = por %p242, %p243
      %p245 = scmp.le.s32.totalorder 1, %s28
      %p246 = scmp.lt.s32.totalorder %s28, 3
      %p247 = pnand %p245, %p246
      %p248 = pneg %p247
      // Predicated region
      $region9: #{tpu_custom_call.1} parent=5 // pred_check
        _
      $region10: #{tpu_custom_call.1} parent=5 // pred_check_branch
        %250 = sbr.rel (%p247) target = $region12
      $region11: #{tpu_custom_call.1} parent=5 // pred_region
        %s251 = ssub.s32 %s28, 1
        // Predicated region
        $region13: #{tpu_custom_call.1} parent=11 // pred_check
          %p252 = pneg %p101
        $region14: #{tpu_custom_call.1} parent=11 // pred_check_branch
          %254 = sbr.rel (%p252) target = $region16
        $region15: #{tpu_custom_call.1} parent=11 // pred_region
          %256 = vsyncadd [#allocation7], 0
          %s258 = sshll.u32 %s2, 4
          %s259 = int_to_ptr.hbm [resolvable:$true] %s258
          %s260 = sshll.u32 [#allocation8], 4
          %s261 = int_to_ptr.vmem [resolvable:$true] %s260
          %263 = dma.hbm_to_vmem [thread:$0]  %s259, 32, %s261, [#allocation7]
        $region16: #{tpu_custom_call.1} parent=11 // pred_fallthru
          _
        // Predicated region
        $region17: #{tpu_custom_call.1} parent=11 // pred_check
          %p264 = pneg %p122
        $region18: #{tpu_custom_call.1} parent=11 // pred_check_branch
          %266 = sbr.rel (%p264) target = $region20
        $region19: #{tpu_custom_call.1} parent=11 // pred_region
          _
        $region20: #{tpu_custom_call.1} parent=11 // pred_fallthru
          _
        // Predicated region
        $region21: #{tpu_custom_call.1} parent=11 // pred_check
          %p267 = pneg %p143
        $region22: #{tpu_custom_call.1} parent=11 // pred_check_branch
          %269 = sbr.rel (%p267) target = $region24
        $region23: #{tpu_custom_call.1} parent=11 // pred_region
          %271 = vsyncadd [#allocation10], 0
          %s272 = sshll.u32 %s4, 4
          %s273 = int_to_ptr.hbm [resolvable:$true] %s272
          %s274 = sshll.u32 [#allocation9], 4
          %s275 = int_to_ptr.vmem [resolvable:$true] %s274
          %280 = dma.hbm_to_vmem [thread:$0]  %s273, 4608, %s275, [#allocation10], 64, 64, 4
        $region24: #{tpu_custom_call.1} parent=11 // pred_fallthru
          _
        // Predicated region
        $region25: #{tpu_custom_call.1} parent=11 // pred_check
          %p281 = pneg %p164
        $region26: #{tpu_custom_call.1} parent=11 // pred_check_branch
          %283 = sbr.rel (%p281) target = $region28
        $region27: #{tpu_custom_call.1} parent=11 // pred_region
          _
        $region28: #{tpu_custom_call.1} parent=11 // pred_fallthru
          _
        // Predicated region
        $region29: #{tpu_custom_call.1} parent=11 // pred_check
          %p284 = pneg %p185
        $region30: #{tpu_custom_call.1} parent=11 // pred_check_branch
          %286 = sbr.rel (%p284) target = $region32
        $region31: #{tpu_custom_call.1} parent=11 // pred_region
          %288 = vsyncadd [#allocation10], 0
          %s289 = sshll.u32 %s6, 4
          %s290 = int_to_ptr.hbm [resolvable:$true] %s289
          %s291 = sshll.u32 [#allocation11], 4
          %s292 = int_to_ptr.vmem [resolvable:$true] %s291
          %297 = dma.hbm_to_vmem [thread:$0]  %s290, 128, %s292, [#allocation10], 64, 64, 4
        $region32: #{tpu_custom_call.1} parent=11 // pred_fallthru
          _
      $region12: #{tpu_custom_call.1} parent=5 // pred_fallthru
        _
      %p298 = scmp.lt.s32.totalorder %s28, 2
      // Predicated region
      $region33: #{tpu_custom_call.1} parent=5 // pred_check
        %p299 = pneg %p298
      $region34: #{tpu_custom_call.1} parent=5 // pred_check_branch
        %301 = sbr.rel (%p299) target = $region36
      $region35: #{tpu_custom_call.1} parent=5 // pred_region
        // Predicated region
        $region37: #{tpu_custom_call.1} parent=35 // pred_check
          %p302 = pneg %p48
        $region38: #{tpu_custom_call.1} parent=35 // pred_check_branch
          %304 = sbr.rel (%p302) target = $region40
        $region39: #{tpu_custom_call.1} parent=35 // pred_region
          %s305 = sand.u32 %s38, 1
          %s306 = scalar_lea.sflag [#allocation4], %s305
          %s307 = sand.u32 %s38, 1
          %s308 = smul.addr %s307, 32
          %s309 = scalar_lea.vmem [#allocation3], %s308
          %311 = vsyncadd %s306, 0
          %s312 = smul.addr %s28, 4
          %s313 = smul.addr %s312, 8
          %s314 = scalar_lea.hbm %s0, %s313
          %s315 = sshll.u32 %s314, 4
          %s316 = int_to_ptr.hbm [resolvable:$true] %s315
          %s317 = sshll.u32 %s309, 4
          %s318 = int_to_ptr.vmem [resolvable:$true] %s317
          %323 = dma.hbm_to_vmem [thread:$0]  %s316, 512, %s318, %s306, 256, 256, 16
        $region40: #{tpu_custom_call.1} parent=35 // pred_fallthru
          _
        // Predicated region
        $region41: #{tpu_custom_call.1} parent=35 // pred_check
          %p324 = pneg %p74
        $region42: #{tpu_custom_call.1} parent=35 // pred_check_branch
          %326 = sbr.rel (%p324) target = $region44
        $region43: #{tpu_custom_call.1} parent=35 // pred_region
          %s327 = sand.u32 %s28, 1
          %s328 = scalar_lea.sflag [#allocation7], %s327
          %s329 = sand.u32 %s64, 1
          %s330 = scalar_lea.vmem [#allocation6], %s329
          %332 = vsyncadd %s328, 0
          %s333 = scalar_lea.hbm %s1, %s28
          %s335 = sshll.u32 %s333, 4
          %s336 = int_to_ptr.hbm [resolvable:$true] %s335
          %s337 = sshll.u32 %s330, 4
          %s338 = int_to_ptr.vmem [resolvable:$true] %s337
          %340 = dma.hbm_to_vmem [thread:$0]  %s336, 16, %s338, %s328
        $region44: #{tpu_custom_call.1} parent=35 // pred_fallthru
          _
      $region36: #{tpu_custom_call.1} parent=5 // pred_fallthru
        _
      %p341 = scmp.le.s32.totalorder 1, %s28
      %p342 = scmp.lt.s32.totalorder %s28, 3
      %p343 = pnand %p341, %p342
      %p344 = pneg %p343
      // Predicated region
      $region45: #{tpu_custom_call.1} parent=5 // pred_check
        _
      $region46: #{tpu_custom_call.1} parent=5 // pred_check_branch
        %346 = sbr.rel (%p343) target = $region48
      $region47: #{tpu_custom_call.1} parent=5 // pred_region
        %s347 = ssub.s32 %s28, 1
        %s348 = sand.u32 %s41, 1
        %s349 = scalar_lea.sflag [#allocation4], %s348
        %s350 = sand.u32 %s41, 1
        %s351 = smul.addr %s350, 32
        %s352 = scalar_lea.vmem [#allocation3], %s351
        // Predicated region
        $region49: #{tpu_custom_call.1} parent=47 // pred_check
          %p353 = pneg %p54
        $region50: #{tpu_custom_call.1} parent=47 // pred_check_branch
          %355 = sbr.rel (%p353) target = $region52
        $region51: #{tpu_custom_call.1} parent=47 // pred_region
          %357 = dma.done %s349, 512
        $region52: #{tpu_custom_call.1} parent=47 // pred_fallthru
          _
        %s358 = sand.u32 %s33, 1
        %s359 = scalar_lea.sflag [#allocation7], %s358
        %s360 = sand.u32 %s67, 1
        %s361 = scalar_lea.vmem [#allocation6], %s360
        // Predicated region
        $region53: #{tpu_custom_call.1} parent=47 // pred_check
          %p362 = pneg %p80
        $region54: #{tpu_custom_call.1} parent=47 // pred_check_branch
          %364 = sbr.rel (%p362) target = $region56
        $region55: #{tpu_custom_call.1} parent=47 // pred_region
          %366 = dma.done %s359, 16
        $region56: #{tpu_custom_call.1} parent=47 // pred_fallthru
          _
        // Predicated region
        $region57: #{tpu_custom_call.1} parent=47 // pred_check
          %p367 = pneg %p101
        $region58: #{tpu_custom_call.1} parent=47 // pred_check_branch
          %369 = sbr.rel (%p367) target = $region60
        $region59: #{tpu_custom_call.1} parent=47 // pred_region
          %371 = dma.done [#allocation7], 32
        $region60: #{tpu_custom_call.1} parent=47 // pred_fallthru
          _
        // Predicated region
        $region61: #{tpu_custom_call.1} parent=47 // pred_check
          %p372 = pneg %p143
        $region62: #{tpu_custom_call.1} parent=47 // pred_check_branch
          %374 = sbr.rel (%p372) target = $region64
        $region63: #{tpu_custom_call.1} parent=47 // pred_region
          %376 = dma.done [#allocation10], 4608
        $region64: #{tpu_custom_call.1} parent=47 // pred_fallthru
          _
        // Predicated region
        $region65: #{tpu_custom_call.1} parent=47 // pred_check
          %p377 = pneg %p185
        $region66: #{tpu_custom_call.1} parent=47 // pred_check_branch
          %379 = sbr.rel (%p377) target = $region68
        $region67: #{tpu_custom_call.1} parent=47 // pred_region
          %381 = dma.done [#allocation10], 128
        $region68: #{tpu_custom_call.1} parent=47 // pred_fallthru
          _
        %s382 = sand.u32 %s41, 1
        %s383 = scalar_lea.sflag [#allocation4], %s382
        %s384 = sand.u32 %s41, 1
        %s385 = smul.addr %s384, 32
        %s386 = scalar_lea.vmem [#allocation3], %s385
        %p387 = pneg %p54
        %p388 = pneg %p51
        %s389 = sand.u32 %s33, 1
        %s390 = scalar_lea.sflag [#allocation7], %s389
        %s391 = sand.u32 %s67, 1
        %s392 = scalar_lea.vmem [#allocation6], %s391
        %p393 = pneg %p80
        %p394 = pneg %p77
        %p395 = pneg %p101
        %p396 = pneg %p98
        %p397 = pneg %p122
        %p398 = pneg %p119
        %p399 = pneg %p143
        %p400 = pneg %p140
        %p401 = pneg %p164
        %p402 = pneg %p161
        %p403 = pneg %p185
        %p404 = pneg %p182
        %p405 = pneg %p211
        %p406 = pneg %p208
        %s407 = sand.u32 %s198, 1
        %s408 = scalar_lea.sflag [#allocation5], %s407
        %s409 = sand.u32 %s198, 1
        %s410 = smul.addr %s409, 16
        %s411 = scalar_lea.vmem [#allocation12], %s410
        %p412 = pneg %p237
        %p413 = pneg %p234
        %s414 = sand.u32 %s224, 1
        %s415 = scalar_lea.sflag [#allocation14], %s414
        %s416 = sand.u32 %s224, 1
        %s417 = smul.addr %s416, 2
        %s418 = scalar_lea.vmem [#allocation13], %s417
        %v420 = vld [vmem:[%s352] sm:$0xff]
        %v421 = vld [vmem:[%s352 + $0x8] sm:$0xff]
        %v422 = vld [vmem:[%s352 + $0x10] sm:$0xff]
        %v423 = vld [vmem:[%s352 + $0x18] sm:$0xff]
        %v424 = vld [vmem:[#allocation8] sm:$0x3]
        %v426 = vperm.slane %v424, 0
        %v427 = vperm.slane %v424, 1
        %v430 = vmul.f32 %v420, %v426
        %v431 = vmul.f32 %v421, %v427
        %v432 = vmul.f32 %v422, %v426
        %v433 = vmul.f32 %v423, %v427
        %v434 = vld [vmem:[%s3] sm:$0x3]
        %v436 = vperm.slane %v434, 0
        %v437 = vperm.slane %v434, 1
        %v440 = vadd.f32 %v430, %v436
        %v441 = vadd.f32 %v431, %v437
        %v442 = vadd.f32 %v432, %v436
        %v443 = vadd.f32 %v433, %v437
        %v444 = vxor.u32 %v440, 2147483648
        %v445 = vxor.u32 %v441, 2147483648
        %v446 = vxor.u32 %v442, 2147483648
        %v447 = vxor.u32 %v443, 2147483648
        %v448 = vmul.f32 %v444, 1.442695
        %v449 = vpow.pop %v448
        %v450 = vmul.f32 %v445, 1.442695
        %v451 = vpow.pop %v450
        %v452 = vmul.f32 %v446, 1.442695
        %v453 = vpow.pop %v452
        %v454 = vmul.f32 %v447, 1.442695
        %v455 = vpow.pop %v454
        %v456 = vadd.f32 %v449, 1.0
        %v457 = vadd.f32 %v451, 1.0
        %v458 = vadd.f32 %v453, 1.0
        %v459 = vadd.f32 %v455, 1.0
        %v460 = vrcp.pop %v456
        %v461 = vmul.f32 %v456, %v460
        %v462 = vsub.f32 1.0, %v461
        %v463 = vmul.f32 %v460, %v462
        %v464 = vadd.f32 %v460, %v463
        %vm465 = vweird.f32 %v456
        %vm466 = vweird.f32 %v460
        %vm467 = vmor %vm465, %vm466
        %v468 = vsel %vm467, %v460, %v464
        %v469 = vand.u32 2147483647, %v456
        %vm470 = vcmp.eq.f32.partialorder %v469, 8.507059e+37
        %v471 = vand.u32 %v456, 2147483648
        %v472 = vor.u32 1.1754944e-38, %v471
        %v473 = vsel %vm470, %v472, %v468
        %v474 = vmul.f32 1.0, %v473
        %v475 = vrcp.pop %v457
        %v476 = vmul.f32 %v457, %v475
        %v477 = vsub.f32 1.0, %v476
        %v478 = vmul.f32 %v475, %v477
        %v479 = vadd.f32 %v475, %v478
        %vm480 = vweird.f32 %v457
        %vm481 = vweird.f32 %v475
        %vm482 = vmor %vm480, %vm481
        %v483 = vsel %vm482, %v475, %v479
        %v484 = vand.u32 2147483647, %v457
        %vm485 = vcmp.eq.f32.partialorder %v484, 8.507059e+37
        %v486 = vand.u32 %v457, 2147483648
        %v487 = vor.u32 1.1754944e-38, %v486
        %v488 = vsel %vm485, %v487, %v483
        %v489 = vmul.f32 1.0, %v488
        %v490 = vrcp.pop %v458
        %v491 = vmul.f32 %v458, %v490
        %v492 = vsub.f32 1.0, %v491
        %v493 = vmul.f32 %v490, %v492
        %v494 = vadd.f32 %v490, %v493
        %vm495 = vweird.f32 %v458
        %vm496 = vweird.f32 %v490
        %vm497 = vmor %vm495, %vm496
        %v498 = vsel %vm497, %v490, %v494
        %v499 = vand.u32 2147483647, %v458
        %vm500 = vcmp.eq.f32.partialorder %v499, 8.507059e+37
        %v501 = vand.u32 %v458, 2147483648
        %v502 = vor.u32 1.1754944e-38, %v501
        %v503 = vsel %vm500, %v502, %v498
        %v504 = vmul.f32 1.0, %v503
        %v505 = vrcp.pop %v459
        %v506 = vmul.f32 %v459, %v505
        %v507 = vsub.f32 1.0, %v506
        %v508 = vmul.f32 %v505, %v507
        %v509 = vadd.f32 %v505, %v508
        %vm510 = vweird.f32 %v459
        %vm511 = vweird.f32 %v505
        %vm512 = vmor %vm510, %vm511
        %v513 = vsel %vm512, %v505, %v509
        %v514 = vand.u32 2147483647, %v459
        %vm515 = vcmp.eq.f32.partialorder %v514, 8.507059e+37
        %v516 = vand.u32 %v459, 2147483648
        %v517 = vor.u32 1.1754944e-38, %v516
        %v518 = vsel %vm515, %v517, %v513
        %v519 = vmul.f32 1.0, %v518
        %v520 = vmul.f32 %v440, %v474
        %v521 = vmul.f32 %v441, %v489
        %v522 = vmul.f32 %v442, %v504
        %v523 = vmul.f32 %v443, %v519
        %vm524 = vcmask 1040384
        %vm525 = vsmask.f32 256
        %vm526 = vmand %vm524, %vm525
        %vm527 = vcmask 520196
        %vm528 = vsmask.f32 4352
        %vm529 = vmand %vm527, %vm528
        %vm530 = vmor %vm529, %vm526
        %v531 = vld [vmem:[#allocation2] sm:$0x11]
        %v532 = vsel %vm530, 0, %v531
        %533 = vst [vmem:[#allocation2] sm:$0x11] %v532
        %vm534 = vsmask.f32 7938
        %vm535 = vmand %vm524, %vm534
        %vm536 = vsmask.f32 7954
        %vm537 = vmand %vm527, %vm536
        %vm538 = vmor %vm537, %vm535
        %v539 = vld [vmem:[#allocation2 + $0x10] sm:$0x11]
        %v540 = vsel %vm538, 0, %v539
        %541 = vst [vmem:[#allocation2 + $0x10] sm:$0x11] %v540
        %v542 = vpack.c.bf16 %v521, %v520
        %v543 = vpack.c.bf16 %v523, %v522
        %vm544 = vsmask.f32 4368
        %vm545 = vmor %vm525, %vm544
        %v547 = vshrl.u32 %v542, 16
        %v549 = vrot.slane %v547, 7
        %v550 = vshll.u32 %v542, 16
        %v552 = vor.u32 %v549, %v550
        %v553 = vrot.slane %v549, 4
        %v555 = vshrl.u32 %v543, 16
        %v557 = vrot.slane %v555, 7
        %v558 = vshll.u32 %v543, 16
        %v560 = vor.u32 %v557, %v558
        %v561 = vsel %vm545, %v553, %v560
        %v562 = vrot.slane %v557, 4
        %vm566 = vcmask 1043456
        %vm567 = vmand %vm566, %vm534
        %vm568 = vcmask 523268
        %vm569 = vmand %vm568, %vm536
        %vm570 = vmor %vm569, %vm567
        %v571 = vld [vmem:[#allocation2] sm:$0xff]
        %v572 = vsel %vm570, %v552, %v571
        %573 = vst [vmem:[#allocation2] sm:$0xff] %v572
        %vm574 = vcmask 1043456
        %vm575 = vcmask 523268
        %vm576 = vmor %vm575, %vm574
        %577 = vst.msk [vmem:[#allocation2 + $0x8] sm:$0xff] %vm576, %v561
        %v578 = vld [vmem:[#allocation2 + $0x10] sm:$0x11]
        %v579 = vsel %vm530, %v562, %v578
        %580 = vst [vmem:[#allocation2 + $0x10] sm:$0x11] %v579
        %v581 = vld [vmem:[%s361] sm:$0x1]
        %v582 = vpack.c.bf16 %v581, %v581
        %v583 = vld [vmem:[#allocation11] sm:$0xf]
        %v584 = vld [vmem:[#allocation11 + $0x4] sm:$0xf]
        %v587 = vunpack.c.l.b16 %v583
        %v588 = vunpack.c.l.b16 %v584
        %v589 = vpack.c.b16 %v588, %v587
        %vm591 = vcmask 130048
        %v593 = vsel %vm591, %v582, 0
        %595 = vmatpush.bf16.msra.mxu0 0
        %596 = vmatpush.bf16.msra.mxu0 0
        %597 = vmatpush.bf16.msra.mxu0 0
        %598 = vmatpush.bf16.msra.mxu0 0
        %599 = vmatpush.bf16.msra.mxu0 0
        %600 = vmatpush.bf16.msra.mxu0 0
        %601 = vmatpush.bf16.msra.mxu0 0
        %602 = vmatpush.bf16.msra.mxu0 %v589
        %603 = vmatmul.bf16.gmra.mxu0 %v593
        %v604 = vpop.f32.mrf.mxu0
        %v605 = vadd.f32 0.0, %v604
        %v606 = vpop.f32.mrf.mxu0
        %607 = vdwg.mxu0
        %v608 = vld [vmem:[%s5] sm:$0x1]
        %v609 = vadd.f32 %v608, %v605
        %v610 = vld [vmem:[#allocation2] sm:$0xff]
        %v611 = vld [vmem:[#allocation2 + $0x8] sm:$0xff]
        %v612 = vld [vmem:[#allocation9] sm:$0xf]
        %v613 = vld [vmem:[#allocation9 + $0x4] sm:$0xf]
        %v614 = vld [vmem:[#allocation9 + $0x8] sm:$0xf]
        %v615 = vld [vmem:[#allocation9 + $0xc] sm:$0xf]
        %v616 = vld [vmem:[#allocation9 + $0x10] sm:$0xf]
        %v617 = vld [vmem:[#allocation9 + $0x14] sm:$0xf]
        %v618 = vld [vmem:[#allocation9 + $0x18] sm:$0xf]
        %v619 = vld [vmem:[#allocation9 + $0x1c] sm:$0xf]
        %v620 = vld [vmem:[#allocation9 + $0x20] sm:$0xf]
        %v621 = vld [vmem:[#allocation9 + $0x24] sm:$0xf]
        %v622 = vld [vmem:[#allocation9 + $0x28] sm:$0xf]
        %v623 = vld [vmem:[#allocation9 + $0x2c] sm:$0xf]
        %v624 = vld [vmem:[#allocation9 + $0x30] sm:$0xf]
        %v625 = vld [vmem:[#allocation9 + $0x34] sm:$0xf]
        %v626 = vld [vmem:[#allocation9 + $0x38] sm:$0xf]
        %v627 = vld [vmem:[#allocation9 + $0x3c] sm:$0xf]
        %v628 = vld [vmem:[#allocation9 + $0x40] sm:$0xf]
        %v629 = vld [vmem:[#allocation9 + $0x44] sm:$0xf]
        %v630 = vld [vmem:[#allocation9 + $0x48] sm:$0xf]
        %v631 = vld [vmem:[#allocation9 + $0x4c] sm:$0xf]
        %v632 = vld [vmem:[#allocation9 + $0x50] sm:$0xf]
        %v633 = vld [vmem:[#allocation9 + $0x54] sm:$0xf]
        %v634 = vld [vmem:[#allocation9 + $0x58] sm:$0xf]
        %v635 = vld [vmem:[#allocation9 + $0x5c] sm:$0xf]
        %v636 = vld [vmem:[#allocation2 + $0x10] sm:$0x11]
        %s637 = scalar_lea.vmem [#allocation9], 96
        %v638 = vld [vmem:[%s637] sm:$0xf]
        %v639 = vld [vmem:[%s637 + $0x4] sm:$0xf]
        %v640 = vld [vmem:[%s637 + $0x8] sm:$0xf]
        %v641 = vld [vmem:[%s637 + $0xc] sm:$0xf]
        %v642 = vld [vmem:[%s637 + $0x10] sm:$0xf]
        %v643 = vld [vmem:[%s637 + $0x14] sm:$0xf]
        %v644 = vld [vmem:[%s637 + $0x18] sm:$0xf]
        %v645 = vld [vmem:[%s637 + $0x1c] sm:$0xf]
        %v646 = vld [vmem:[%s637 + $0x20] sm:$0xf]
        %v647 = vld [vmem:[%s637 + $0x24] sm:$0xf]
        %v648 = vld [vmem:[%s637 + $0x28] sm:$0xf]
        %v649 = vld [vmem:[%s637 + $0x2c] sm:$0xf]
        %v650 = vld [vmem:[%s637 + $0x30] sm:$0xf]
        %v651 = vld [vmem:[%s637 + $0x34] sm:$0xf]
        %v652 = vld [vmem:[%s637 + $0x38] sm:$0xf]
        %v653 = vld [vmem:[%s637 + $0x3c] sm:$0xf]
        %v654 = vld [vmem:[%s637 + $0x40] sm:$0xf]
        %v655 = vld [vmem:[%s637 + $0x44] sm:$0xf]
        %v656 = vld [vmem:[%s637 + $0x48] sm:$0xf]
        %v657 = vld [vmem:[%s637 + $0x4c] sm:$0xf]
        %v658 = vld [vmem:[%s637 + $0x50] sm:$0xf]
        %v659 = vld [vmem:[%s637 + $0x54] sm:$0xf]
        %v660 = vld [vmem:[%s637 + $0x58] sm:$0xf]
        %v661 = vld [vmem:[%s637 + $0x5c] sm:$0xf]
        %v665 = vunpack.c.l.b16 %v610
        %v666 = vunpack.c.h.b16 %v610
        %v667 = vunpack.c.l.b16 %v611
        %v668 = vunpack.c.h.b16 %v611
        %v669 = vunpack.c.l.b16 %v636
        %v670 = vunpack.c.h.b16 %v636
        %v671 = vpack.c.b16 %v667, %v665
        %v672 = vpack.c.b16 %v668, %v666
        %v673 = vpack.c.b16 %v669, %v669
        %v674 = vpack.c.b16 %v670, %v670
        %vm675 = vsmask.f32 7424
        %v677 = vshrl.u32 %v671, 16
        %v679 = vshll.u32 %v671, 16
        %v681 = vrot.slane %v679, 1
        %v682 = vor.u32 %v677, %v681
        %v684 = vshll.u32 %v673, 16
        %v686 = vrot.slane %v684, 1
        %v687 = vsel %vm675, %v682, %v686
        %v689 = vshrl.u32 %v672, 16
        %v691 = vshll.u32 %v672, 16
        %v693 = vrot.slane %v691, 1
        %v694 = vor.u32 %v689, %v693
        %v696 = vshll.u32 %v674, 16
        %v698 = vrot.slane %v696, 1
        %v699 = vsel %vm675, %v694, %v698
        %v725 = vunpack.c.l.b16 %v638
        %v726 = vunpack.c.l.b16 %v639
        %v727 = vunpack.c.l.b16 %v640
        %v728 = vunpack.c.l.b16 %v641
        %v729 = vunpack.c.l.b16 %v642
        %v730 = vunpack.c.l.b16 %v643
        %v731 = vunpack.c.l.b16 %v644
        %v732 = vunpack.c.l.b16 %v645
        %v733 = vunpack.c.l.b16 %v646
        %v734 = vunpack.c.l.b16 %v647
        %v735 = vunpack.c.l.b16 %v648
        %v736 = vunpack.c.l.b16 %v649
        %v737 = vunpack.c.l.b16 %v650
        %v738 = vunpack.c.l.b16 %v651
        %v739 = vunpack.c.l.b16 %v652
        %v740 = vunpack.c.l.b16 %v653
        %v741 = vunpack.c.l.b16 %v654
        %v742 = vunpack.c.l.b16 %v655
        %v743 = vunpack.c.l.b16 %v656
        %v744 = vunpack.c.l.b16 %v657
        %v745 = vunpack.c.l.b16 %v658
        %v746 = vunpack.c.l.b16 %v659
        %v747 = vunpack.c.l.b16 %v660
        %v748 = vunpack.c.l.b16 %v661
        %v749 = vpack.c.b16 %v726, %v725
        %v750 = vpack.c.b16 %v728, %v727
        %v751 = vpack.c.b16 %v730, %v729
        %v752 = vpack.c.b16 %v732, %v731
        %v753 = vpack.c.b16 %v734, %v733
        %v754 = vpack.c.b16 %v736, %v735
        %v755 = vpack.c.b16 %v738, %v737
        %v756 = vpack.c.b16 %v740, %v739
        %v757 = vpack.c.b16 %v742, %v741
        %v758 = vpack.c.b16 %v744, %v743
        %v759 = vpack.c.b16 %v746, %v745
        %v760 = vpack.c.b16 %v748, %v747
        %vm773 = vcmask 523264
        %v775 = vsel %vm773, %v699, 0
        %777 = vmatpush.bf16.msra.mxu0 %v756
        %778 = vmatpush.bf16.msra.mxu0 %v755
        %779 = vmatpush.bf16.msra.mxu0 %v754
        %780 = vmatpush.bf16.msra.mxu0 %v753
        %781 = vmatpush.bf16.msra.mxu0 %v752
        %782 = vmatpush.bf16.msra.mxu0 %v751
        %783 = vmatpush.bf16.msra.mxu0 %v750
        %784 = vmatpush.bf16.msra.mxu0 %v749
        %785 = vmatmul.bf16.gmra.mxu0 %v687
        %v786 = vpop.f32.mrf.mxu0
        %v787 = vadd.f32 0.0, %v786
        %v788 = vpop.f32.mrf.mxu0
        %v789 = vadd.f32 0.0, %v788
        %790 = vdwg.mxu0
        %791 = vmatpush.bf16.msra.mxu0 0
        %792 = vmatpush.bf16.msra.mxu0 0
        %793 = vmatpush.bf16.msra.mxu0 0
        %794 = vmatpush.bf16.msra.mxu0 0
        %795 = vmatpush.bf16.msra.mxu0 %v760
        %796 = vmatpush.bf16.msra.mxu0 %v759
        %797 = vmatpush.bf16.msra.mxu0 %v758
        %798 = vmatpush.bf16.msra.mxu0 %v757
        %799 = vmatmul.bf16.gmra.mxu0 %v775
        %v800 = vpop.f32.mrf.mxu0
        %v801 = vadd.f32 %v787, %v800
        %v802 = vpop.f32.mrf.mxu0
        %v803 = vadd.f32 %v789, %v802
        %804 = vdwg.mxu0
        %v830 = vunpack.c.l.b16 %v612
        %v831 = vunpack.c.l.b16 %v613
        %v832 = vunpack.c.l.b16 %v614
        %v833 = vunpack.c.l.b16 %v615
        %v834 = vunpack.c.l.b16 %v616
        %v835 = vunpack.c.l.b16 %v617
        %v836 = vunpack.c.l.b16 %v618
        %v837 = vunpack.c.l.b16 %v619
        %v838 = vunpack.c.l.b16 %v620
        %v839 = vunpack.c.l.b16 %v621
        %v840 = vunpack.c.l.b16 %v622
        %v841 = vunpack.c.l.b16 %v623
        %v842 = vunpack.c.l.b16 %v624
        %v843 = vunpack.c.l.b16 %v625
        %v844 = vunpack.c.l.b16 %v626
        %v845 = vunpack.c.l.b16 %v627
        %v846 = vunpack.c.l.b16 %v628
        %v847 = vunpack.c.l.b16 %v629
        %v848 = vunpack.c.l.b16 %v630
        %v849 = vunpack.c.l.b16 %v631
        %v850 = vunpack.c.l.b16 %v632
        %v851 = vunpack.c.l.b16 %v633
        %v852 = vunpack.c.l.b16 %v634
        %v853 = vunpack.c.l.b16 %v635
        %v854 = vpack.c.b16 %v831, %v830
        %v855 = vpack.c.b16 %v833, %v832
        %v856 = vpack.c.b16 %v835, %v834
        %v857 = vpack.c.b16 %v837, %v836
        %v858 = vpack.c.b16 %v839, %v838
        %v859 = vpack.c.b16 %v841, %v840
        %v860 = vpack.c.b16 %v843, %v842
        %v861 = vpack.c.b16 %v845, %v844
        %v862 = vpack.c.b16 %v847, %v846
        %v863 = vpack.c.b16 %v849, %v848
        %v864 = vpack.c.b16 %v851, %v850
        %v865 = vpack.c.b16 %v853, %v852
        %v878 = vsel %vm773, %v672, 0
        %880 = vmatpush.bf16.msra.mxu0 %v861
        %881 = vmatpush.bf16.msra.mxu0 %v860
        %882 = vmatpush.bf16.msra.mxu0 %v859
        %883 = vmatpush.bf16.msra.mxu0 %v858
        %884 = vmatpush.bf16.msra.mxu0 %v857
        %885 = vmatpush.bf16.msra.mxu0 %v856
        %886 = vmatpush.bf16.msra.mxu0 %v855
        %887 = vmatpush.bf16.msra.mxu0 %v854
        %888 = vmatmul.bf16.gmra.mxu0 %v671
        %v889 = vpop.f32.mrf.mxu0
        %v890 = vadd.f32 %v801, %v889
        %v891 = vpop.f32.mrf.mxu0
        %v892 = vadd.f32 %v803, %v891
        %893 = vdwg.mxu0
        %894 = vmatpush.bf16.msra.mxu0 0
        %895 = vmatpush.bf16.msra.mxu0 0
        %896 = vmatpush.bf16.msra.mxu0 0
        %897 = vmatpush.bf16.msra.mxu0 0
        %898 = vmatpush.bf16.msra.mxu0 %v865
        %899 = vmatpush.bf16.msra.mxu0 %v864
        %900 = vmatpush.bf16.msra.mxu0 %v863
        %901 = vmatpush.bf16.msra.mxu0 %v862
        %902 = vmatmul.bf16.gmra.mxu0 %v878
        %v903 = vpop.f32.mrf.mxu0
        %v904 = vadd.f32 %v890, %v903
        %v905 = vpop.f32.mrf.mxu0
        %v906 = vadd.f32 %v892, %v905
        %907 = vdwg.mxu0
        %v908 = vld [vmem:[#allocation2] sm:$0xee]
        %s909 = scalar_lea.vmem [#allocation9], 192
        %v910 = vld [vmem:[%s909] sm:$0xf]
        %v911 = vld [vmem:[%s909 + $0x4] sm:$0xf]
        %v912 = vld [vmem:[%s909 + $0x8] sm:$0xf]
        %v913 = vld [vmem:[%s909 + $0xc] sm:$0xf]
        %v914 = vld [vmem:[%s909 + $0x10] sm:$0xf]
        %v915 = vld [vmem:[%s909 + $0x14] sm:$0xf]
        %v916 = vld [vmem:[%s909 + $0x18] sm:$0xf]
        %v917 = vld [vmem:[%s909 + $0x1c] sm:$0xf]
        %v918 = vld [vmem:[%s909 + $0x20] sm:$0xf]
        %v919 = vld [vmem:[%s909 + $0x24] sm:$0xf]
        %v920 = vld [vmem:[%s909 + $0x28] sm:$0xf]
        %v921 = vld [vmem:[%s909 + $0x2c] sm:$0xf]
        %v922 = vld [vmem:[%s909 + $0x30] sm:$0xf]
        %v923 = vld [vmem:[%s909 + $0x34] sm:$0xf]
        %v924 = vld [vmem:[%s909 + $0x38] sm:$0xf]
        %v925 = vld [vmem:[%s909 + $0x3c] sm:$0xf]
        %v926 = vld [vmem:[%s909 + $0x40] sm:$0xf]
        %v927 = vld [vmem:[%s909 + $0x44] sm:$0xf]
        %v928 = vld [vmem:[%s909 + $0x48] sm:$0xf]
        %v929 = vld [vmem:[%s909 + $0x4c] sm:$0xf]
        %v930 = vld [vmem:[%s909 + $0x50] sm:$0xf]
        %v931 = vld [vmem:[%s909 + $0x54] sm:$0xf]
        %v932 = vld [vmem:[%s909 + $0x58] sm:$0xf]
        %v933 = vld [vmem:[%s909 + $0x5c] sm:$0xf]
        %v935 = vunpack.c.l.b16 %v908
        %v936 = vunpack.c.h.b16 %v908
        %v937 = vpack.c.b16 %v667, %v935
        %v938 = vpack.c.b16 %v668, %v936
        %vm939 = vcmask 1046528
        %v940 = vrot.slane %v937, 1
        %v941 = vrot.slane %v673, 1
        %v942 = vsel %vm939, %v940, %v941
        %v943 = vrot.slane %v938, 1
        %v944 = vrot.slane %v674, 1
        %v945 = vsel %vm939, %v943, %v944
        %v971 = vunpack.c.l.b16 %v910
        %v972 = vunpack.c.l.b16 %v911
        %v973 = vunpack.c.l.b16 %v912
        %v974 = vunpack.c.l.b16 %v913
        %v975 = vunpack.c.l.b16 %v914
        %v976 = vunpack.c.l.b16 %v915
        %v977 = vunpack.c.l.b16 %v916
        %v978 = vunpack.c.l.b16 %v917
        %v979 = vunpack.c.l.b16 %v918
        %v980 = vunpack.c.l.b16 %v919
        %v981 = vunpack.c.l.b16 %v920
        %v982 = vunpack.c.l.b16 %v921
        %v983 = vunpack.c.l.b16 %v922
        %v984 = vunpack.c.l.b16 %v923
        %v985 = vunpack.c.l.b16 %v924
        %v986 = vunpack.c.l.b16 %v925
        %v987 = vunpack.c.l.b16 %v926
        %v988 = vunpack.c.l.b16 %v927
        %v989 = vunpack.c.l.b16 %v928
        %v990 = vunpack.c.l.b16 %v929
        %v991 = vunpack.c.l.b16 %v930
        %v992 = vunpack.c.l.b16 %v931
        %v993 = vunpack.c.l.b16 %v932
        %v994 = vunpack.c.l.b16 %v933
        %v995 = vpack.c.b16 %v972, %v971
        %v996 = vpack.c.b16 %v974, %v973
        %v997 = vpack.c.b16 %v976, %v975
        %v998 = vpack.c.b16 %v978, %v977
        %v999 = vpack.c.b16 %v980, %v979
        %v1000 = vpack.c.b16 %v982, %v981
        %v1001 = vpack.c.b16 %v984, %v983
        %v1002 = vpack.c.b16 %v986, %v985
        %v1003 = vpack.c.b16 %v988, %v987
        %v1004 = vpack.c.b16 %v990, %v989
        %v1005 = vpack.c.b16 %v992, %v991
        %v1006 = vpack.c.b16 %v994, %v993
        %v1020 = vsel %vm773, %v945, 0
        %1022 = vmatpush.bf16.msra.mxu0 %v1002
        %1023 = vmatpush.bf16.msra.mxu0 %v1001
        %1024 = vmatpush.bf16.msra.mxu0 %v1000
        %1025 = vmatpush.bf16.msra.mxu0 %v999
        %1026 = vmatpush.bf16.msra.mxu0 %v998
        %1027 = vmatpush.bf16.msra.mxu0 %v997
        %1028 = vmatpush.bf16.msra.mxu0 %v996
        %1029 = vmatpush.bf16.msra.mxu0 %v995
        %1030 = vmatmul.bf16.gmra.mxu0 %v942
        %v1031 = vpop.f32.mrf.mxu0
        %v1032 = vadd.f32 0.0, %v1031
        %v1033 = vpop.f32.mrf.mxu0
        %v1034 = vadd.f32 0.0, %v1033
        %1035 = vdwg.mxu0
        %1036 = vmatpush.bf16.msra.mxu0 0
        %1037 = vmatpush.bf16.msra.mxu0 0
        %1038 = vmatpush.bf16.msra.mxu0 0
        %1039 = vmatpush.bf16.msra.mxu0 0
        %1040 = vmatpush.bf16.msra.mxu0 %v1006
        %1041 = vmatpush.bf16.msra.mxu0 %v1005
        %1042 = vmatpush.bf16.msra.mxu0 %v1004
        %1043 = vmatpush.bf16.msra.mxu0 %v1003
        %1044 = vmatmul.bf16.gmra.mxu0 %v1020
        %v1045 = vpop.f32.mrf.mxu0
        %v1046 = vadd.f32 %v1032, %v1045
        %v1047 = vpop.f32.mrf.mxu0
        %v1048 = vadd.f32 %v1034, %v1047
        %1049 = vdwg.mxu0
        %v1050 = vadd.f32 %v904, %v1046
        %v1051 = vadd.f32 %v906, %v1048
        %v1053 = vperm.slane %v609, 0
        %v1055 = vadd.f32 %v1050, %v1053
        %v1056 = vadd.f32 %v1051, %v1053
        %1057 = vst [vmem:[%s411] sm:$0xff] %v1055
        %1058 = vst [vmem:[%s411 + $0x8] sm:$0xff] %v1056
        %v1059 = vadd.f32 %v1055, %v1056
        %v1060 = vrot.slane %v1059, 4
        %v1061 = vadd.f32 %v1059, %v1060
        %v1062 = vrot.slane %v1061, 2
        %v1063 = vadd.f32 %v1061, %v1062
        %v1064 = vrot.slane %v1063, 1
        %v1065 = vadd.f32 %v1063, %v1064
        %v1066 = vmul.f32 %v1055, %v1055
        %v1067 = vmul.f32 %v1056, %v1056
        %v1068 = vadd.f32 %v1066, %v1067
        %v1069 = vrot.slane %v1068, 4
        %v1070 = vadd.f32 %v1068, %v1069
        %v1071 = vrot.slane %v1070, 2
        %v1072 = vadd.f32 %v1070, %v1071
        %v1073 = vrot.slane %v1072, 1
        %v1074 = vadd.f32 %v1072, %v1073
        %vm1075 = vcmask 1040384
        %v1076 = vsel %vm1075, %v1065, %v1074
        %1077 = vst [vmem:[%s418] sm:$0x3] %v1076
        %s1078 = sand.u32 %s198, 1
        %s1079 = scalar_lea.sflag [#allocation5], %s1078
        %s1080 = sand.u32 %s198, 1
        %s1081 = smul.addr %s1080, 16
        %s1082 = scalar_lea.vmem [#allocation12], %s1081
        %s1083 = sand.u32 %s224, 1
        %s1084 = scalar_lea.sflag [#allocation14], %s1083
        %s1085 = sand.u32 %s224, 1
        %s1086 = smul.addr %s1085, 2
        %s1087 = scalar_lea.vmem [#allocation13], %s1086
        // Predicated region
        $region69: #{tpu_custom_call.1} parent=47 // pred_check
          %p1088 = pneg %p208
        $region70: #{tpu_custom_call.1} parent=47 // pred_check_branch
          %1090 = sbr.rel (%p1088) target = $region72
        $region71: #{tpu_custom_call.1} parent=47 // pred_region
          %1092 = vsyncadd %s1079, 0
          %s1093 = smul.addr %s33, 2
          %s1094 = smul.addr %s1093, 8
          %s1095 = scalar_lea.hbm %s7, %s1094
          %s1096 = sshll.u32 %s1082, 4
          %s1097 = int_to_ptr.vmem [resolvable:$true] %s1096
          %s1098 = sshll.u32 %s1095, 4
          %s1099 = int_to_ptr.hbm [resolvable:$true] %s1098
          %1104 = dma.vmem_to_hbm [thread:$0]  %s1097, 256, %s1099, %s1079, 128, 128, 8
        $region72: #{tpu_custom_call.1} parent=47 // pred_fallthru
          _
        // Predicated region
        $region73: #{tpu_custom_call.1} parent=47 // pred_check
          %p1105 = pneg %p234
        $region74: #{tpu_custom_call.1} parent=47 // pred_check_branch
          %1107 = sbr.rel (%p1105) target = $region76
        $region75: #{tpu_custom_call.1} parent=47 // pred_region
          %1109 = vsyncadd %s1084, 0
          %s1110 = smul.addr %s33, 2
          %s1111 = scalar_lea.hbm %s8, %s1110
          %s1113 = sshll.u32 %s1087, 4
          %s1114 = int_to_ptr.vmem [resolvable:$true] %s1113
          %s1115 = sshll.u32 %s1111, 4
          %s1116 = int_to_ptr.hbm [resolvable:$true] %s1115
          %1118 = dma.vmem_to_hbm [thread:$0]  %s1114, 32, %s1116, %s1084
        $region76: #{tpu_custom_call.1} parent=47 // pred_fallthru
          _
      $region48: #{tpu_custom_call.1} parent=5 // pred_fallthru
        _
      %p1119 = scmp.le.s32.totalorder 2, %s28
      // Predicated region
      $region77: #{tpu_custom_call.1} parent=5 // pred_check
        %p1120 = pneg %p1119
      $region78: #{tpu_custom_call.1} parent=5 // pred_check_branch
        %1122 = sbr.rel (%p1120) target = $region80
      $region79: #{tpu_custom_call.1} parent=5 // pred_region
        %s1123 = ssub.s32 %s28, 2
        // Predicated region
        $region81: #{tpu_custom_call.1} parent=79 // pred_check
          %p1124 = pneg %p214
        $region82: #{tpu_custom_call.1} parent=79 // pred_check_branch
          %1126 = sbr.rel (%p1124) target = $region84
        $region83: #{tpu_custom_call.1} parent=79 // pred_region
          %s1127 = sand.u32 %s199, 1
          %s1128 = scalar_lea.sflag [#allocation5], %s1127
          %s1129 = sand.u32 %s199, 1
          %s1130 = smul.addr %s1129, 16
          %s1131 = scalar_lea.vmem [#allocation12], %s1130
          %1133 = dma.done %s1128, 256
        $region84: #{tpu_custom_call.1} parent=79 // pred_fallthru
          _
        // Predicated region
        $region85: #{tpu_custom_call.1} parent=79 // pred_check
          %p1134 = pneg %p240
        $region86: #{tpu_custom_call.1} parent=79 // pred_check_branch
          %1136 = sbr.rel (%p1134) target = $region88
        $region87: #{tpu_custom_call.1} parent=79 // pred_region
          %s1137 = sand.u32 %s225, 1
          %s1138 = scalar_lea.sflag [#allocation14], %s1137
          %s1139 = sand.u32 %s225, 1
          %s1140 = smul.addr %s1139, 2
          %s1141 = scalar_lea.vmem [#allocation13], %s1140
          %1143 = dma.done %s1138, 32
        $region88: #{tpu_custom_call.1} parent=79 // pred_fallthru
          _
      $region80: #{tpu_custom_call.1} parent=5 // pred_fallthru
        _
    $region6: #{tpu_custom_call.1} parent=1 // loop_footer
      %s32 = sadd.s32 1, %s28
    $region7: #{tpu_custom_call.1} parent=1 // loop_footer_branch
      %27 = sbr.rel target = $region3
    $region8: #{tpu_custom_call.1} parent=1 // loop_exit
      _
    %1144 = vsyncpa [#allocation4], 1
    %s1145 = scalar_lea.sflag [#allocation4], 1
    %1146 = vsyncpa %s1145, 1
    %1147 = vsyncpa [#allocation7], 1
    %s1148 = scalar_lea.sflag [#allocation7], 1
    %1149 = vsyncpa %s1148, 1
    %1150 = vsyncpa [#allocation10], 1
    %1151 = vsyncpa [#allocation5], 1
    %s1152 = scalar_lea.sflag [#allocation5], 1
    %1153 = vsyncpa %s1152, 1
    %1154 = vsyncpa [#allocation14], 1
    %s1155 = scalar_lea.sflag [#allocation14], 1
    %1156 = vsyncpa %s1155, 1

</llo_original>
